<compile_context>
chip_gen: v5e
topology: v5e:2x2
jax: 0.10.0
libtpu: 0.0.40
codegen_flags: <defaults>
</compile_context>

<pallas_src>
import functools
import math

import jax
import jax.numpy as jnp
from jax.experimental import pallas as pl
from jax.experimental.pallas import tpu as pltpu


def _ppo_normalizer_kernel(gamma, epsilon,
                           count_ref,        # SMEM (1,) f32: Welford count
                           value_ref,        # VMEM (B, TF)
                           expmean_ref,      # VMEM (B, TF): old exponential mean
                           mu_ref,           # VMEM (1, TF): old Welford mean
                           m2_ref,           # VMEM (1, TF): old Welford M2
                           out_ref,          # VMEM (B, TF): normalized output
                           new_expmean_ref,  # VMEM (B, TF)  (aliased to expmean)
                           new_mu_ref,       # VMEM (1, TF)  (aliased to mu)
                           new_m2_ref):      # VMEM (1, TF)  (aliased to m2)
    B = value_ref.shape[0]
    gamma_pow_B = gamma ** B          # static python scalar
    log_gamma = math.log(gamma)       # static python scalar

    value = value_ref[...]

    # coefficients = gamma ** arange(B), computed in-kernel (EUP exp) instead
    # of shipping a third full-size (B, F) stream from HBM.
    row = jax.lax.broadcasted_iota(jnp.int32, value.shape, 0).astype(jnp.float32)
    coeff = jnp.exp(row * log_gamma)

    # exponential_mean = gamma^B * exponential_mean + value * coefficients
    exp_new = gamma_pow_B * expmean_ref[...] + value * coeff
    new_expmean_ref[...] = exp_new

    # Welford aggregator batch update (reduction over B stays inside the
    # F tile, so all F tiles are independent).
    b_count = float(B)
    b_mean = jnp.mean(exp_new, axis=0, keepdims=True)               # (1, TF)
    b_m2 = jnp.sum((exp_new - b_mean) ** 2, axis=0, keepdims=True)  # (1, TF)

    cnt = count_ref[0]
    n = cnt + b_count
    delta = b_mean - mu_ref[...]
    m2_new = m2_ref[...] + b_m2 + delta * delta * (cnt * b_count / n)
    mu_new = mu_ref[...] + delta * (b_count / n)
    new_mu_ref[...] = mu_new
    new_m2_ref[...] = m2_new

    # Normalize: value / (stdev + eps) when count > 2, else passthrough.
    # One approximate reciprocal per feature column (EUP slot, effectively
    # free) plus a per-element multiply (VPU), instead of B*TF divides.
    stdev = jnp.sqrt(m2_new / n)                        # (1, TF)
    inv = pl.reciprocal(stdev + epsilon, approx=True)   # (1, TF)
    out_ref[...] = jnp.where(n > 2.0, value * inv, value)


def _round_up(x, m):
    return pl.cdiv(x, m) * m


def ppo_normalizer_forward(value, exp_mean, count, mu, m2, *,
                           gamma, epsilon=1e-5, tile_f=None,
                           vmem_budget_bytes=12 * 1024 * 1024):
    """Eval-mode forward of PPONormalizer (the mode that updates stats).

    value:    (B, F) f32  -- observation batch, leading dims flattened to B
    exp_mean: (B, F) f32  -- running exponential-mean state (zeros initially)
    count:    scalar f32  -- Welford count
    mu, m2:   (F,)   f32  -- Welford mean / M2
    Returns (out, new_exp_mean, new_count, new_mu, new_m2).
    """
    # TODO(synk): train-mode forward (no stat update) is a trivial
    # passthrough / normalize and is not routed through this kernel.
    assert gamma > 0.0
    B, F = value.shape

    if tile_f is None:
        f_pad = _round_up(F, 128)
        # ~8 double-buffered (B, tile_f) f32 tiles are live at once, i.e.
        # ~32*B*tile_f bytes; keep that under the budget so the kernel also
        # fits v7x's smaller (64 MiB physical / 32 MiB scoped) VMEM.
        cap = max(128, min(2048, (vmem_budget_bytes // (32 * B)) // 128 * 128))
        tile_f = min(cap, f_pad)
        while f_pad % tile_f:
            tile_f -= 128
    else:
        assert tile_f % 128 == 0
        f_pad = _round_up(F, tile_f)
    # TODO(synk): very large B would additionally need a B-tiled two-pass
    # Welford reduction; not implemented here.

    pad = f_pad - F

    def pad_lanes(x):
        return jnp.pad(x, ((0, 0), (0, pad))) if pad else x

    value_p = pad_lanes(value.astype(jnp.float32))
    exp_mean_p = pad_lanes(exp_mean.astype(jnp.float32))
    mu_p = pad_lanes(jnp.asarray(mu, jnp.float32).reshape(1, F))
    m2_p = pad_lanes(jnp.asarray(m2, jnp.float32).reshape(1, F))
    count_arr = jnp.asarray(count, jnp.float32).reshape(1)

    kernel = functools.partial(_ppo_normalizer_kernel, gamma, epsilon)
    bf_spec = pl.BlockSpec((B, tile_f), lambda j: (0, j))
    row_spec = pl.BlockSpec((1, tile_f), lambda j: (0, j))

    out_p, new_exp_mean_p, new_mu_p, new_m2_p = pl.pallas_call(
        kernel,
        grid=(f_pad // tile_f,),
        in_specs=[
            pl.BlockSpec(memory_space=pltpu.MemorySpace.SMEM),  # count
            bf_spec,    # value
            bf_spec,    # exp_mean
            row_spec,   # mu
            row_spec,   # m2
        ],
        out_specs=(bf_spec, bf_spec, row_spec, row_spec),
        out_shape=(
            jax.ShapeDtypeStruct((B, f_pad), jnp.float32),  # normalized value
            jax.ShapeDtypeStruct((B, f_pad), jnp.float32),  # new exponential mean
            jax.ShapeDtypeStruct((1, f_pad), jnp.float32),  # new Welford mu
            jax.ShapeDtypeStruct((1, f_pad), jnp.float32),  # new Welford m2
        ),
        # State outputs alias their inputs (in-place buffer semantics of the
        # PyTorch module).  Input indices: 0=count, 1=value, 2=exp_mean,
        # 3=mu, 4=m2; output indices: 0=out, 1=new_exp_mean, 2=new_mu, 3=new_m2.
        input_output_aliases={2: 1, 3: 2, 4: 3},
        compiler_params=pltpu.CompilerParams(
            # F tiles are independent: shard across the 2 TCs on v7x.
            dimension_semantics=("parallel",),
            vmem_limit_bytes=32 * 1024 * 1024,
        ),
    )(count_arr, value_p, exp_mean_p, mu_p, m2_p)

    out = out_p[:, :F]
    new_exp_mean = new_exp_mean_p[:, :F]
    new_mu = new_mu_p[0, :F]
    new_m2 = new_m2_p[0, :F]
    new_count = jnp.asarray(count, jnp.float32) + float(B)
    return out, new_exp_mean, new_count, new_mu, new_m2


def _reference_forward(value, state, gamma, epsilon):
    """Pure-JAX stateful reference of PPONormalizer.forward in eval mode."""
    exp_mean, count, mu, m2 = state
    B = value.shape[0]
    coeff = gamma ** jnp.arange(B, dtype=jnp.float32)[:, None]
    exp_mean = gamma ** B * exp_mean + value * coeff
    b_mean = exp_mean.mean(axis=0)
    b_m2 = ((exp_mean - b_mean) ** 2).sum(axis=0)
    n = count + B
    delta = b_mean - mu
    m2 = m2 + b_m2 + delta ** 2 * (count * B / n)
    mu = mu + delta * (B / n)
    count = n
    stdev = jnp.sqrt(m2 / count)
    out = jnp.where(count > 2, value / (stdev + epsilon), value)
    return out, (exp_mean, count, mu, m2)


if __name__ == "__main__":
    gamma, epsilon = 0.99, 1e-5
    key = jax.random.PRNGKey(0)
    k1, k2, k3 = jax.random.split(key, 3)

    # Case 1: F multiple of 128, forced tile_f=128 -> a 3-step pipelined grid.
    # Two sequential calls exercise the stateful chaining.
    B, F = 32, 384
    exp_mean = jnp.zeros((B, F), jnp.float32)
    count = 0.0
    mu = jnp.zeros((F,), jnp.float32)
    m2 = jnp.zeros((F,), jnp.float32)
    ref_state = (jnp.zeros((B, F), jnp.float32), 0.0,
                 jnp.zeros((F,), jnp.float32), jnp.zeros((F,), jnp.float32))

    for k in (k1, k2):
        v = jax.random.normal(k, (B, F), dtype=jnp.float32)
        out, exp_mean, count, mu, m2 = ppo_normalizer_forward(
            v, exp_mean, count, mu, m2, gamma=gamma, epsilon=epsilon, tile_f=128)
        jax.block_until_ready((out, exp_mean, count, mu, m2))
        ref_out, ref_state = _reference_forward(v, ref_state, gamma, epsilon)
        # Exact-math state path: tight tolerance.
        assert jnp.allclose(exp_mean, ref_state[0], rtol=1e-4, atol=1e-4)
        assert jnp.allclose(mu, ref_state[2], rtol=1e-4, atol=1e-4)
        assert jnp.allclose(m2, ref_state[3], rtol=1e-4, atol=1e-4)
        assert jnp.allclose(count, ref_state[1])
        # Output goes through the EUP approximate reciprocal -> looser tol.
        assert jnp.allclose(out, ref_out, rtol=2e-2, atol=2e-2)

    # Case 2: F not a multiple of 128 -> exercises the lane-padding path and
    # the automatic tile-size selection (single-tile grid).
    B2, F2 = 8, 200
    v3 = jax.random.normal(k3, (B2, F2), dtype=jnp.float32)
    st2 = (jnp.zeros((B2, F2), jnp.float32), 0.0,
           jnp.zeros((F2,), jnp.float32), jnp.zeros((F2,), jnp.float32))
    out2, em2, c2, mu2, m22 = ppo_normalizer_forward(
        v3, st2[0], st2[1], st2[2], st2[3], gamma=gamma, epsilon=epsilon)
    jax.block_until_ready((out2, em2, c2, mu2, m22))
    ref_out2, ref_st2 = _reference_forward(v3, st2, gamma, epsilon)
    assert jnp.allclose(em2, ref_st2[0], rtol=1e-4, atol=1e-4)
    assert jnp.allclose(mu2, ref_st2[2], rtol=1e-4, atol=1e-4)
    assert jnp.allclose(m22, ref_st2[3], rtol=1e-4, atol=1e-4)
    assert jnp.allclose(c2, ref_st2[1])
    assert jnp.allclose(out2, ref_out2, rtol=2e-2, atol=2e-2)

    print("KERNEL_OK")
</pallas_src>

<mosaic_0001>
module attributes {stable_mosaic.version = 11 : i64} {
  func.func @_ppo_normalizer_kernel(%arg0: i32, %arg1: memref<1xf32, #tpu.memory_space<smem>>, %arg2: memref<32x128xf32, #tpu.memory_space<vmem>>, %arg3: memref<32x128xf32, #tpu.memory_space<vmem>>, %arg4: memref<1x128xf32, #tpu.memory_space<vmem>>, %arg5: memref<1x128xf32, #tpu.memory_space<vmem>>, %arg6: memref<32x128xf32, #tpu.memory_space<vmem>>, %arg7: memref<32x128xf32, #tpu.memory_space<vmem>>, %arg8: memref<1x128xf32, #tpu.memory_space<vmem>>, %arg9: memref<1x128xf32, #tpu.memory_space<vmem>>) attributes {dimension_semantics = [#tpu.dimension_semantics<parallel>], iteration_bounds = array<i64: 3>, scalar_prefetch = 0 : i64, scratch_operands = 0 : i64, tpu.core_type = #tpu.core_type<tc>, window_params = [{transform_indices = @transform_0, window_bounds = array<i64: 1>}, {transform_indices = @transform_1, window_bounds = array<i64: 32, 128>}, {transform_indices = @transform_2, window_bounds = array<i64: 32, 128>}, {transform_indices = @transform_3, window_bounds = array<i64: 1, 128>}, {transform_indices = @transform_4, window_bounds = array<i64: 1, 128>}, {transform_indices = @transform_5, window_bounds = array<i64: 32, 128>}, {transform_indices = @transform_6, window_bounds = array<i64: 32, 128>}, {transform_indices = @transform_7, window_bounds = array<i64: 1, 128>}, {transform_indices = @transform_8, window_bounds = array<i64: 1, 128>}]} {
    %c0 = arith.constant 0 : index
    %c0_0 = arith.constant 0 : index
    %0 = vector.load %arg2[%c0, %c0_0] : memref<32x128xf32, #tpu.memory_space<vmem>>, vector<32x128xf32>
    %1 = tpu.iota {dimensions = array<i32: 0>} : vector<32x128xi32>
    %2 = arith.sitofp %1 : vector<32x128xi32> to vector<32x128xf32>
    %cst = arith.constant -0.0100503359 : f32
    %3 = vector.broadcast %cst : f32 to vector<32x128xf32>
    %4 = arith.mulf %2, %3 : vector<32x128xf32>
    %5 = math.exp %4 : vector<32x128xf32>
    %c0_1 = arith.constant 0 : index
    %c0_2 = arith.constant 0 : index
    %6 = vector.load %arg3[%c0_1, %c0_2] : memref<32x128xf32, #tpu.memory_space<vmem>>, vector<32x128xf32>
    %cst_3 = arith.constant 0.724980354 : f32
    %7 = vector.broadcast %cst_3 : f32 to vector<32x128xf32>
    %8 = arith.mulf %7, %6 : vector<32x128xf32>
    %9 = arith.mulf %0, %5 : vector<32x128xf32>
    %10 = arith.addf %8, %9 : vector<32x128xf32>
    %c0_4 = arith.constant 0 : index
    %c0_5 = arith.constant 0 : index
    %11 = vector.load %arg7[%c0_4, %c0_5] : memref<32x128xf32, #tpu.memory_space<vmem>>, vector<32x128xf32>
    tpu.vector_store %arg7[%c0_4, %c0_5], %10 {strides = array<i32>} : memref<32x128xf32, #tpu.memory_space<vmem>>, vector<32x128xf32>,
    %cst_6 = arith.constant dense<0.000000e+00> : vector<128xf32>
    %12 = vector.multi_reduction <add>, %10, %cst_6 [0] : vector<32x128xf32> to vector<128xf32>
    %13 = vector.shape_cast %12 : vector<128xf32> to vector<1x128xf32>
    %cst_7 = arith.constant 3.200000e+01 : f32
    %14 = vector.broadcast %cst_7 : f32 to vector<1x128xf32>
    %15 = arith.divf %13, %14 : vector<1x128xf32>
    %16 = vector.broadcast %15 : vector<1x128xf32> to vector<32x128xf32>
    %17 = arith.subf %10, %16 : vector<32x128xf32>
    %18 = arith.mulf %17, %17 : vector<32x128xf32>
    %cst_8 = arith.constant dense<0.000000e+00> : vector<128xf32>
    %19 = vector.multi_reduction <add>, %18, %cst_8 [0] : vector<32x128xf32> to vector<128xf32>
    %20 = vector.shape_cast %19 : vector<128xf32> to vector<1x128xf32>
    %c0_9 = arith.constant 0 : index
    %21 = memref.load %arg1[%c0_9] : memref<1xf32, #tpu.memory_space<smem>>
    %cst_10 = arith.constant 3.200000e+01 : f32
    %22 = arith.addf %21, %cst_10 : f32
    %c0_11 = arith.constant 0 : index
    %c0_12 = arith.constant 0 : index
    %23 = vector.load %arg4[%c0_11, %c0_12] : memref<1x128xf32, #tpu.memory_space<vmem>>, vector<1x128xf32>
    %24 = arith.subf %15, %23 : vector<1x128xf32>
    %c0_13 = arith.constant 0 : index
    %c0_14 = arith.constant 0 : index
    %25 = vector.load %arg5[%c0_13, %c0_14] : memref<1x128xf32, #tpu.memory_space<vmem>>, vector<1x128xf32>
    %26 = arith.addf %25, %20 : vector<1x128xf32>
    %27 = arith.mulf %24, %24 : vector<1x128xf32>
    %cst_15 = arith.constant 3.200000e+01 : f32
    %28 = arith.mulf %21, %cst_15 : f32
    %29 = arith.divf %28, %22 : f32
    %30 = vector.broadcast %29 : f32 to vector<1x128xf32>
    %31 = arith.mulf %27, %30 : vector<1x128xf32>
    %32 = arith.addf %26, %31 : vector<1x128xf32>
    %c0_16 = arith.constant 0 : index
    %c0_17 = arith.constant 0 : index
    %33 = vector.load %arg4[%c0_16, %c0_17] : memref<1x128xf32, #tpu.memory_space<vmem>>, vector<1x128xf32>
    %cst_18 = arith.constant 3.200000e+01 : f32
    %34 = arith.divf %cst_18, %22 : f32
    %35 = vector.broadcast %34 : f32 to vector<1x128xf32>
    %36 = arith.mulf %24, %35 : vector<1x128xf32>
    %37 = arith.addf %33, %36 : vector<1x128xf32>
    %c0_19 = arith.constant 0 : index
    %c0_20 = arith.constant 0 : index
    %38 = vector.load %arg8[%c0_19, %c0_20] : memref<1x128xf32, #tpu.memory_space<vmem>>, vector<1x128xf32>
    tpu.vector_store %arg8[%c0_19, %c0_20], %37 {strides = array<i32>} : memref<1x128xf32, #tpu.memory_space<vmem>>, vector<1x128xf32>,
    %c0_21 = arith.constant 0 : index
    %c0_22 = arith.constant 0 : index
    %39 = vector.load %arg9[%c0_21, %c0_22] : memref<1x128xf32, #tpu.memory_space<vmem>>, vector<1x128xf32>
    tpu.vector_store %arg9[%c0_21, %c0_22], %32 {strides = array<i32>} : memref<1x128xf32, #tpu.memory_space<vmem>>, vector<1x128xf32>,
    %40 = vector.broadcast %22 : f32 to vector<1x128xf32>
    %41 = arith.divf %32, %40 : vector<1x128xf32>
    %42 = math.sqrt %41 : vector<1x128xf32>
    %cst_23 = arith.constant 9.99999974E-6 : f32
    %43 = vector.broadcast %cst_23 : f32 to vector<1x128xf32>
    %44 = arith.addf %42, %43 : vector<1x128xf32>
    %45 = tpu.reciprocal %44 {approx = true} : vector<1x128xf32> -> vector<1x128xf32>
    %cst_24 = arith.constant 2.000000e+00 : f32
    %46 = arith.cmpf ogt, %22, %cst_24 : f32
    %47 = vector.broadcast %45 : vector<1x128xf32> to vector<32x128xf32>
    %48 = arith.mulf %0, %47 : vector<32x128xf32>
    %49 = arith.select %46, %48, %0 : vector<32x128xf32>
    %c0_25 = arith.constant 0 : index
    %c0_26 = arith.constant 0 : index
    %50 = vector.load %arg6[%c0_25, %c0_26] : memref<32x128xf32, #tpu.memory_space<vmem>>, vector<32x128xf32>
    tpu.vector_store %arg6[%c0_25, %c0_26], %49 {strides = array<i32>} : memref<32x128xf32, #tpu.memory_space<vmem>>, vector<32x128xf32>,
    return
  }
  func.func @transform_0(%arg0: i32) -> i32 {
    %c0_i32 = arith.constant 0 : i32
    %c0_i32_0 = arith.constant 0 : i32
    return %c0_i32 : i32
  }
  func.func @transform_1(%arg0: i32) -> (i32, i32) {
    %c0_i32 = arith.constant 0 : i32
    %c0_i32_0 = arith.constant 0 : i32
    return %c0_i32, %arg0 : i32, i32
  }
  func.func @transform_2(%arg0: i32) -> (i32, i32) {
    %c0_i32 = arith.constant 0 : i32
    %c0_i32_0 = arith.constant 0 : i32
    return %c0_i32, %arg0 : i32, i32
  }
  func.func @transform_3(%arg0: i32) -> (i32, i32) {
    %c0_i32 = arith.constant 0 : i32
    %c0_i32_0 = arith.constant 0 : i32
    return %c0_i32, %arg0 : i32, i32
  }
  func.func @transform_4(%arg0: i32) -> (i32, i32) {
    %c0_i32 = arith.constant 0 : i32
    %c0_i32_0 = arith.constant 0 : i32
    return %c0_i32, %arg0 : i32, i32
  }
  func.func @transform_5(%arg0: i32) -> (i32, i32) {
    %c0_i32 = arith.constant 0 : i32
    %c0_i32_0 = arith.constant 0 : i32
    return %c0_i32, %arg0 : i32, i32
  }
  func.func @transform_6(%arg0: i32) -> (i32, i32) {
    %c0_i32 = arith.constant 0 : i32
    %c0_i32_0 = arith.constant 0 : i32
    return %c0_i32, %arg0 : i32, i32
  }
  func.func @transform_7(%arg0: i32) -> (i32, i32) {
    %c0_i32 = arith.constant 0 : i32
    %c0_i32_0 = arith.constant 0 : i32
    return %c0_i32, %arg0 : i32, i32
  }
  func.func @transform_8(%arg0: i32) -> (i32, i32) {
    %c0_i32 = arith.constant 0 : i32
    %c0_i32_0 = arith.constant 0 : i32
    return %c0_i32, %arg0 : i32, i32
  }
}

</mosaic_0001>

<llo_original>
// kernel: tpu_custom_call.1
$region0: #{tpu_custom_call.1}
  #allocation0 [shape = 'u32[]', space=smem, size = 0x4, offset = 0x4, fixed_abs, tag = 'smem constant byte address 0x4 - core index']
  #allocation1 [shape = 'u32[72,128]{1,0:T(1,128)}', space=vmem, size = 0x9000, scoped, tag = 'internal scratch']
  #allocation2 [shape = 'f32[1]{0:T(128)S(6)}', space=smem, size = 0x200, scoped, tag = 'scoped memory for tpu_custom_call.1']
  %s0 = inlined_call_operand.<no memory space> [shape: f32[1], index: 0, kind: input, shape index: {}]
  %s1 = inlined_call_operand.vmem [shape: f32[32,384], index: 1, kind: input, shape index: {}]
  %s2 = inlined_call_operand.hbm [shape: f32[32,384], index: 2, kind: input, shape index: {}, may-alias: {2,6}]
  %s3 = inlined_call_operand.hbm [shape: f32[1,384], index: 3, kind: input, shape index: {}, may-alias: {3,7}]
  %s4 = inlined_call_operand.hbm [shape: f32[1,384], index: 4, kind: input, shape index: {}, may-alias: {4,8}]
  %s5 = inlined_call_operand.hbm [shape: f32[32,384], index: 5, kind: output, shape index: {0}]
  %s6 = inlined_call_operand.hbm [shape: f32[32,384], index: 6, kind: output, shape index: {1}, may-alias: {2,6}]
  %s7 = inlined_call_operand.hbm [shape: f32[1,384], index: 7, kind: output, shape index: {2}, may-alias: {3,7}]
  %s8 = inlined_call_operand.hbm [shape: f32[1,384], index: 8, kind: output, shape index: {3}, may-alias: {4,8}]
  %9 = xla_tuple %s5, %s6, %s7, %s8
  %s10 = sld [smem:[#allocation0]]
  $region127: #{tpu_custom_call.1} parent=0
    _
  %s12 = ssub.s32 1, %s10
  %s13 = scalar_select 0, %s12, %s10
  %14 = sst [smem:[#allocation2]] %s0
  $region1: #{tpu_custom_call.1} parent=0
    #allocation3 [shape = 'u8[32768]{0}', space=vmem, size = 0x8000, scoped, tag = 'input window, operand 1']
    #allocation4 [shape = 'u8[32768]{0}', space=vmem, size = 0x8000, scoped, tag = 'input window, operand 2']
    #allocation5 [shape = 's32[2]{0}', space=sflag, size = 0x8, scoped, tag = 'scoped memory for tpu_custom_call.1']
    #allocation6 [shape = 's32[2]{0}', space=sflag, size = 0x8, scoped, tag = 'scoped memory for tpu_custom_call.1']
    #allocation7 [shape = 'u8[1024]{0}', space=vmem, size = 0x400, scoped, tag = 'input window, operand 3']
    #allocation8 [shape = 's32[2]{0}', space=sflag, size = 0x8, scoped, tag = 'scoped memory for tpu_custom_call.1']
    #allocation9 [shape = 'u8[1024]{0}', space=vmem, size = 0x400, scoped, tag = 'input window, operand 4']
    #allocation10 [shape = 'u8[32768]{0}', space=vmem, size = 0x8000, scoped, tag = 'output window, operand 0']
    #allocation11 [shape = 'u8[32768]{0}', space=vmem, size = 0x8000, scoped, tag = 'output window, operand 1']
    #allocation12 [shape = 's32[2]{0}', space=sflag, size = 0x8, scoped, tag = 'scoped memory for tpu_custom_call.1']
    #allocation13 [shape = 'u8[1024]{0}', space=vmem, size = 0x400, scoped, tag = 'output window, operand 2']
    #allocation14 [shape = 'u8[1024]{0}', space=vmem, size = 0x400, scoped, tag = 'output window, operand 3']
    #allocation15 [shape = 's32[2]{0}', space=sflag, size = 0x8, scoped, tag = 'scoped memory for tpu_custom_call.1']
    %15 = vsyncpa [#allocation5], 0
    %s16 = scalar_lea.sflag [#allocation5], 1
    %17 = vsyncpa %s16, 0
    %18 = vsyncpa [#allocation8], 0
    %s19 = scalar_lea.sflag [#allocation8], 1
    %20 = vsyncpa %s19, 0
    %21 = vsyncpa [#allocation6], 0
    %s22 = scalar_lea.sflag [#allocation6], 1
    %23 = vsyncpa %s22, 0
    %24 = vsyncpa [#allocation12], 0
    %s25 = scalar_lea.sflag [#allocation12], 1
    %26 = vsyncpa %s25, 0
    %27 = vsyncpa [#allocation15], 0
    %s28 = scalar_lea.sflag [#allocation15], 1
    %29 = vsyncpa %s28, 0
    loop: start=0, step=1, limit=5
    $region2: #{tpu_custom_call.1} parent=1 // loop_pre_header
      _
    $region3: #{tpu_custom_call.1} parent=1 // loop_header
      %s31 = sphi 0, %s35
      %p32 = scmp.ge.s32.totalorder %s31, 5
      %s39 = sphi 0, %s39
      %s41 = sphi 0, %s39
      %s42 = sphi 0, %s41
      %s56 = sphi 0, %s42
      %s62 = sphi 0, %s64
      %s65 = sphi 0, %s62
      %s66 = sphi 0, %s65
      %s82 = sphi 0, %s66
      %s88 = sphi 0, %s90
      %s91 = sphi 0, %s88
      %s92 = sphi 0, %s91
      %s108 = sphi 0, %s92
      %s114 = sphi 0, %s116
      %s117 = sphi 0, %s114
      %s118 = sphi 0, %s117
      %s134 = sphi 0, %s118
      %s140 = sphi 0, %s142
      %s143 = sphi 0, %s140
      %s144 = sphi 0, %s143
      %s160 = sphi 0, %s144
      %s166 = sphi 0, %s168
      %s169 = sphi 0, %s166
      %s170 = sphi 0, %s169
      %s186 = sphi 0, %s170
      %s192 = sphi 0, %s194
      %s195 = sphi 0, %s192
      %s196 = sphi 0, %s195
      %s212 = sphi 0, %s196
      %s218 = sphi 0, %s220
      %s221 = sphi 0, %s218
      %s222 = sphi 0, %s221
      %s238 = sphi 0, %s222
      %s244 = sphi 0, %s246
      %s247 = sphi 0, %s244
      %s248 = sphi 0, %s247
      %s264 = sphi 0, %s248
    $region4: #{tpu_custom_call.1} parent=1 // loop_header_branch
      %34 = sbr.rel (%p32) target = $region8
    $region5: #{tpu_custom_call.1} parent=1 // loop_body
      %s36 = ssub.s32 %s31, 1
      %s37 = ssub.s32 %s31, 2
      %s38 = sadd.s32 %s31, 1
      %s40 = sadd.s32 %s39, 1
      %p43 = scmp.eq.s32.totalorder %s31, 2
      %p44 = scmp.ne.s32.totalorder %s39, %s41
      %p45 = scmp.eq.s32.totalorder %s31, 0
      %p46 = por %p44, %p45
      %p47 = scmp.ne.s32.totalorder %s39, %s41
      %p48 = scmp.eq.s32.totalorder %s36, 2
      %p49 = por %p47, %p48
      %p50 = scmp.ne.s32.totalorder %s41, %s42
      %p51 = scmp.eq.s32.totalorder %s36, 0
      %p52 = por %p50, %p51
      %p53 = scmp.ne.s32.totalorder %s41, %s42
      %p54 = scmp.eq.s32.totalorder %s37, 2
      %p55 = por %p53, %p54
      %p57 = scmp.ne.s32.totalorder %s42, %s56
      %p58 = scmp.eq.s32.totalorder %s37, 0
      %p59 = por %p57, %p58
      %s60 = ssub.s32 %s31, %s38
      %p61 = scmp.eq.s32.totalorder %s60, 0
      %s63 = sadd.s32 %s62, 1
      %s64 = scalar_select %p61, %s62, %s63
      %p67 = pneg %p61
      %p68 = scmp.eq.s32.totalorder %s31, 2
      %p69 = por %p67, %p68
      %p70 = scmp.ne.s32.totalorder %s62, %s65
      %p71 = scmp.eq.s32.totalorder %s31, 0
      %p72 = por %p70, %p71
      %p73 = scmp.ne.s32.totalorder %s62, %s65
      %p74 = scmp.eq.s32.totalorder %s36, 2
      %p75 = por %p73, %p74
      %p76 = scmp.ne.s32.totalorder %s65, %s66
      %p77 = scmp.eq.s32.totalorder %s36, 0
      %p78 = por %p76, %p77
      %p79 = scmp.ne.s32.totalorder %s65, %s66
      %p80 = scmp.eq.s32.totalorder %s37, 2
      %p81 = por %p79, %p80
      %p83 = scmp.ne.s32.totalorder %s66, %s82
      %p84 = scmp.eq.s32.totalorder %s37, 0
      %p85 = por %p83, %p84
      %s86 = ssub.s32 %s31, %s38
      %p87 = scmp.eq.s32.totalorder %s86, 0
      %s89 = sadd.s32 %s88, 1
      %s90 = scalar_select %p87, %s88, %s89
      %p93 = pneg %p87
      %p94 = scmp.eq.s32.totalorder %s31, 2
      %p95 = por %p93, %p94
      %p96 = scmp.ne.s32.totalorder %s88, %s91
      %p97 = scmp.eq.s32.totalorder %s31, 0
      %p98 = por %p96, %p97
      %p99 = scmp.ne.s32.totalorder %s88, %s91
      %p100 = scmp.eq.s32.totalorder %s36, 2
      %p101 = por %p99, %p100
      %p102 = scmp.ne.s32.totalorder %s91, %s92
      %p103 = scmp.eq.s32.totalorder %s36, 0
      %p104 = por %p102, %p103
      %p105 = scmp.ne.s32.totalorder %s91, %s92
      %p106 = scmp.eq.s32.totalorder %s37, 2
      %p107 = por %p105, %p106
      %p109 = scmp.ne.s32.totalorder %s92, %s108
      %p110 = scmp.eq.s32.totalorder %s37, 0
      %p111 = por %p109, %p110
      %s112 = ssub.s32 %s31, %s38
      %p113 = scmp.eq.s32.totalorder %s112, 0
      %s115 = sadd.s32 %s114, 1
      %s116 = scalar_select %p113, %s114, %s115
      %p119 = pneg %p113
      %p120 = scmp.eq.s32.totalorder %s31, 2
      %p121 = por %p119, %p120
      %p122 = scmp.ne.s32.totalorder %s114, %s117
      %p123 = scmp.eq.s32.totalorder %s31, 0
      %p124 = por %p122, %p123
      %p125 = scmp.ne.s32.totalorder %s114, %s117
      %p126 = scmp.eq.s32.totalorder %s36, 2
      %p127 = por %p125, %p126
      %p128 = scmp.ne.s32.totalorder %s117, %s118
      %p129 = scmp.eq.s32.totalorder %s36, 0
      %p130 = por %p128, %p129
      %p131 = scmp.ne.s32.totalorder %s117, %s118
      %p132 = scmp.eq.s32.totalorder %s37, 2
      %p133 = por %p131, %p132
      %p135 = scmp.ne.s32.totalorder %s118, %s134
      %p136 = scmp.eq.s32.totalorder %s37, 0
      %p137 = por %p135, %p136
      %s138 = ssub.s32 %s31, %s38
      %p139 = scmp.eq.s32.totalorder %s138, 0
      %s141 = sadd.s32 %s140, 1
      %s142 = scalar_select %p139, %s140, %s141
      %p145 = pneg %p139
      %p146 = scmp.eq.s32.totalorder %s31, 2
      %p147 = por %p145, %p146
      %p148 = scmp.ne.s32.totalorder %s140, %s143
      %p149 = scmp.eq.s32.totalorder %s31, 0
      %p150 = por %p148, %p149
      %p151 = scmp.ne.s32.totalorder %s140, %s143
      %p152 = scmp.eq.s32.totalorder %s36, 2
      %p153 = por %p151, %p152
      %p154 = scmp.ne.s32.totalorder %s143, %s144
      %p155 = scmp.eq.s32.totalorder %s36, 0
      %p156 = por %p154, %p155
      %p157 = scmp.ne.s32.totalorder %s143, %s144
      %p158 = scmp.eq.s32.totalorder %s37, 2
      %p159 = por %p157, %p158
      %p161 = scmp.ne.s32.totalorder %s144, %s160
      %p162 = scmp.eq.s32.totalorder %s37, 0
      %p163 = por %p161, %p162
      %s164 = ssub.s32 %s31, %s38
      %p165 = scmp.eq.s32.totalorder %s164, 0
      %s167 = sadd.s32 %s166, 1
      %s168 = scalar_select %p165, %s166, %s167
      %p171 = pneg %p165
      %p172 = scmp.eq.s32.totalorder %s31, 2
      %p173 = por %p171, %p172
      %p174 = scmp.ne.s32.totalorder %s166, %s169
      %p175 = scmp.eq.s32.totalorder %s31, 0
      %p176 = por %p174, %p175
      %p177 = scmp.ne.s32.totalorder %s166, %s169
      %p178 = scmp.eq.s32.totalorder %s36, 2
      %p179 = por %p177, %p178
      %p180 = scmp.ne.s32.totalorder %s169, %s170
      %p181 = scmp.eq.s32.totalorder %s36, 0
      %p182 = por %p180, %p181
      %p183 = scmp.ne.s32.totalorder %s169, %s170
      %p184 = scmp.eq.s32.totalorder %s37, 2
      %p185 = por %p183, %p184
      %p187 = scmp.ne.s32.totalorder %s170, %s186
      %p188 = scmp.eq.s32.totalorder %s37, 0
      %p189 = por %p187, %p188
      %s190 = ssub.s32 %s31, %s38
      %p191 = scmp.eq.s32.totalorder %s190, 0
      %s193 = sadd.s32 %s192, 1
      %s194 = scalar_select %p191, %s192, %s193
      %p197 = pneg %p191
      %p198 = scmp.eq.s32.totalorder %s31, 2
      %p199 = por %p197, %p198
      %p200 = scmp.ne.s32.totalorder %s192, %s195
      %p201 = scmp.eq.s32.totalorder %s31, 0
      %p202 = por %p200, %p201
      %p203 = scmp.ne.s32.totalorder %s192, %s195
      %p204 = scmp.eq.s32.totalorder %s36, 2
      %p205 = por %p203, %p204
      %p206 = scmp.ne.s32.totalorder %s195, %s196
      %p207 = scmp.eq.s32.totalorder %s36, 0
      %p208 = por %p206, %p207
      %p209 = scmp.ne.s32.totalorder %s195, %s196
      %p210 = scmp.eq.s32.totalorder %s37, 2
      %p211 = por %p209, %p210
      %p213 = scmp.ne.s32.totalorder %s196, %s212
      %p214 = scmp.eq.s32.totalorder %s37, 0
      %p215 = por %p213, %p214
      %s216 = ssub.s32 %s31, %s38
      %p217 = scmp.eq.s32.totalorder %s216, 0
      %s219 = sadd.s32 %s218, 1
      %s220 = scalar_select %p217, %s218, %s219
      %p223 = pneg %p217
      %p224 = scmp.eq.s32.totalorder %s31, 2
      %p225 = por %p223, %p224
      %p226 = scmp.ne.s32.totalorder %s218, %s221
      %p227 = scmp.eq.s32.totalorder %s31, 0
      %p228 = por %p226, %p227
      %p229 = scmp.ne.s32.totalorder %s218, %s221
      %p230 = scmp.eq.s32.totalorder %s36, 2
      %p231 = por %p229, %p230
      %p232 = scmp.ne.s32.totalorder %s221, %s222
      %p233 = scmp.eq.s32.totalorder %s36, 0
      %p234 = por %p232, %p233
      %p235 = scmp.ne.s32.totalorder %s221, %s222
      %p236 = scmp.eq.s32.totalorder %s37, 2
      %p237 = por %p235, %p236
      %p239 = scmp.ne.s32.totalorder %s222, %s238
      %p240 = scmp.eq.s32.totalorder %s37, 0
      %p241 = por %p239, %p240
      %s242 = ssub.s32 %s31, %s38
      %p243 = scmp.eq.s32.totalorder %s242, 0
      %s245 = sadd.s32 %s244, 1
      %s246 = scalar_select %p243, %s244, %s245
      %p249 = pneg %p243
      %p250 = scmp.eq.s32.totalorder %s31, 2
      %p251 = por %p249, %p250
      %p252 = scmp.ne.s32.totalorder %s244, %s247
      %p253 = scmp.eq.s32.totalorder %s31, 0
      %p254 = por %p252, %p253
      %p255 = scmp.ne.s32.totalorder %s244, %s247
      %p256 = scmp.eq.s32.totalorder %s36, 2
      %p257 = por %p255, %p256
      %p258 = scmp.ne.s32.totalorder %s247, %s248
      %p259 = scmp.eq.s32.totalorder %s36, 0
      %p260 = por %p258, %p259
      %p261 = scmp.ne.s32.totalorder %s247, %s248
      %p262 = scmp.eq.s32.totalorder %s37, 2
      %p263 = por %p261, %p262
      %p265 = scmp.ne.s32.totalorder %s248, %s264
      %p266 = scmp.eq.s32.totalorder %s37, 0
      %p267 = por %p265, %p266
      %p268 = scmp.le.s32.totalorder 1, %s31
      %p269 = scmp.lt.s32.totalorder %s31, 4
      %p270 = pnand %p268, %p269
      %p271 = pneg %p270
      // Predicated region
      $region9: #{tpu_custom_call.1} parent=5 // pred_check
        _
      $region10: #{tpu_custom_call.1} parent=5 // pred_check_branch
        %273 = sbr.rel (%p270) target = $region12
      $region11: #{tpu_custom_call.1} parent=5 // pred_region
        %s274 = ssub.s32 %s31, 1
        // Predicated region
        $region13: #{tpu_custom_call.1} parent=11 // pred_check
          %p275 = pneg %p52
        $region14: #{tpu_custom_call.1} parent=11 // pred_check_branch
          %277 = sbr.rel (%p275) target = $region16
        $region15: #{tpu_custom_call.1} parent=11 // pred_region
          _
        $region16: #{tpu_custom_call.1} parent=11 // pred_fallthru
          _
      $region12: #{tpu_custom_call.1} parent=5 // pred_fallthru
        _
      %p278 = scmp.lt.s32.totalorder %s31, 3
      // Predicated region
      $region17: #{tpu_custom_call.1} parent=5 // pred_check
        %p279 = pneg %p278
      $region18: #{tpu_custom_call.1} parent=5 // pred_check_branch
        %281 = sbr.rel (%p279) target = $region20
      $region19: #{tpu_custom_call.1} parent=5 // pred_region
        // Predicated region
        $region21: #{tpu_custom_call.1} parent=19 // pred_check
          %p282 = pneg %p72
        $region22: #{tpu_custom_call.1} parent=19 // pred_check_branch
          %284 = sbr.rel (%p282) target = $region24
        $region23: #{tpu_custom_call.1} parent=19 // pred_region
          %s285 = sand.u32 %s62, 1
          %s286 = sand.u32 %s62, 1
          %s287 = smul.addr %s286, 32
          %s288 = scalar_lea.vmem [#allocation3], %s287
          %s289 = smul.addr %s31, 8
          %s290 = scalar_lea.vmem %s1, %s289
          // Predicated region
          $region25: #{tpu_custom_call.1} parent=23 // pred_check
            _
          $region26: #{tpu_custom_call.1} parent=23 // pred_check_branch
            %292 = sbr.rel (0) target = $region28
          $region27: #{tpu_custom_call.1} parent=23 // pred_region
            // Predicated region
            $region29: #{tpu_custom_call.1} parent=27 // pred_check
              _
            $region30: #{tpu_custom_call.1} parent=27 // pred_check_branch
              %294 = sbr.rel (0) target = $region32
            $region31: #{tpu_custom_call.1} parent=27 // pred_region
              // Predicated region
              $region44: #{tpu_custom_call.1} parent=31 // pred_check
                _
              $region45: #{tpu_custom_call.1} parent=31 // pred_check_branch
                %316 = sbr.rel (0) target = $region47
              $region46: #{tpu_custom_call.1} parent=31 // pred_region
                loop: start=0, step=1, limit=1
                $region48: #{tpu_custom_call.1} parent=46 // loop_pre_header
                  _
                $region49: #{tpu_custom_call.1} parent=46 // loop_header
                  %s318 = sphi 0, %s322
                  %p319 = scmp.ge.s32.totalorder %s318, 1
                  %s323 = sphi %s290, %s290
                  %s324 = sphi %s288, %s288
                $region50: #{tpu_custom_call.1} parent=46 // loop_header_branch
                  %321 = sbr.rel (%p319) target = $region54
                $region51: #{tpu_custom_call.1} parent=46 // loop_body
                  %v325 = vld [vmem:[%s323] sm:$0xff]
                  %326 = vst [vmem:[%s324] sm:$0xff] %v325
                  %v327 = vld [vmem:[%s323 + $0x18] sm:$0xff]
                  %328 = vst [vmem:[%s324 + $0x8] sm:$0xff] %v327
                  %v329 = vld [vmem:[%s323 + $0x30] sm:$0xff]
                  %330 = vst [vmem:[%s324 + $0x10] sm:$0xff] %v329
                  %v331 = vld [vmem:[%s323 + $0x48] sm:$0xff]
                  %332 = vst [vmem:[%s324 + $0x18] sm:$0xff] %v331
                $region52: #{tpu_custom_call.1} parent=46 // loop_footer
                  %s322 = sadd.s32 1, %s318
                $region53: #{tpu_custom_call.1} parent=46 // loop_footer_branch
                  %317 = sbr.rel target = $region49
                $region54: #{tpu_custom_call.1} parent=46 // loop_exit
                  _
              $region47: #{tpu_custom_call.1} parent=31 // pred_fallthru
                _
              // Predicated region
              $region55: #{tpu_custom_call.1} parent=31 // pred_check
                _
              $region56: #{tpu_custom_call.1} parent=31 // pred_check_branch
                %334 = sbr.rel target = $region58
              $region57: #{tpu_custom_call.1} parent=31 // pred_region
                _
              $region58: #{tpu_custom_call.1} parent=31 // pred_fallthru
                _
            $region32: #{tpu_custom_call.1} parent=27 // pred_fallthru
              _
            // Predicated region
            $region33: #{tpu_custom_call.1} parent=27 // pred_check
              _
            $region34: #{tpu_custom_call.1} parent=27 // pred_check_branch
              %296 = sbr.rel target = $region36
            $region35: #{tpu_custom_call.1} parent=27 // pred_region
              %s298 = ssub.s32 256, 1
              loop: start=0, step=1, limit=1
              $region37: #{tpu_custom_call.1} parent=35 // loop_pre_header
                _
              $region38: #{tpu_custom_call.1} parent=35 // loop_header
                %s300 = sphi 0, %s304
                %p301 = scmp.ge.s32.totalorder %s300, 1
                %s305 = sphi %s290, %s290
                %s306 = sphi %s288, %s288
              $region39: #{tpu_custom_call.1} parent=35 // loop_header_branch
                %303 = sbr.rel (%p301) target = $region43
              $region40: #{tpu_custom_call.1} parent=35 // loop_body
                %v307 = vld [vmem:[%s305] sm:%s298]
                %308 = vst [vmem:[%s306] sm:%s298] %v307
                %v309 = vld [vmem:[%s305 + $0x18] sm:%s298]
                %310 = vst [vmem:[%s306 + $0x8] sm:%s298] %v309
                %v311 = vld [vmem:[%s305 + $0x30] sm:%s298]
                %312 = vst [vmem:[%s306 + $0x10] sm:%s298] %v311
                %v313 = vld [vmem:[%s305 + $0x48] sm:%s298]
                %314 = vst [vmem:[%s306 + $0x18] sm:%s298] %v313
              $region41: #{tpu_custom_call.1} parent=35 // loop_footer
                %s304 = sadd.s32 1, %s300
              $region42: #{tpu_custom_call.1} parent=35 // loop_footer_branch
                %299 = sbr.rel target = $region38
              $region43: #{tpu_custom_call.1} parent=35 // loop_exit
                _
            $region36: #{tpu_custom_call.1} parent=27 // pred_fallthru
              _
          $region28: #{tpu_custom_call.1} parent=23 // pred_fallthru
            _
          %335 = vnop
        $region24: #{tpu_custom_call.1} parent=19 // pred_fallthru
          _
        // Predicated region
        $region59: #{tpu_custom_call.1} parent=19 // pred_check
          %p336 = pneg %p98
        $region60: #{tpu_custom_call.1} parent=19 // pred_check_branch
          %338 = sbr.rel (%p336) target = $region62
        $region61: #{tpu_custom_call.1} parent=19 // pred_region
          %s339 = sand.u32 %s88, 1
          %s340 = scalar_lea.sflag [#allocation5], %s339
          %s341 = sand.u32 %s88, 1
          %s342 = smul.addr %s341, 32
          %s343 = scalar_lea.vmem [#allocation4], %s342
          %345 = vsyncadd %s340, 0
          %s346 = smul.addr %s31, 8
          %s347 = scalar_lea.hbm %s2, %s346
          %s348 = sshll.u32 %s347, 4
          %s349 = int_to_ptr.hbm [resolvable:$true] %s348
          %s350 = sshll.u32 %s343, 4
          %s351 = int_to_ptr.vmem [resolvable:$true] %s350
          %356 = dma.hbm_to_vmem [thread:$0]  %s349, 512, %s351, %s340, 384, 128, 8
        $region62: #{tpu_custom_call.1} parent=19 // pred_fallthru
          _
        // Predicated region
        $region63: #{tpu_custom_call.1} parent=19 // pred_check
          %p357 = pneg %p124
        $region64: #{tpu_custom_call.1} parent=19 // pred_check_branch
          %359 = sbr.rel (%p357) target = $region66
        $region65: #{tpu_custom_call.1} parent=19 // pred_region
          %s360 = sand.u32 %s31, 1
          %s361 = scalar_lea.sflag [#allocation8], %s360
          %s362 = sand.u32 %s114, 1
          %s363 = scalar_lea.vmem [#allocation7], %s362
          %365 = vsyncadd %s361, 0
          %s366 = scalar_lea.hbm %s3, %s31
          %s368 = sshll.u32 %s366, 4
          %s369 = int_to_ptr.hbm [resolvable:$true] %s368
          %s370 = sshll.u32 %s363, 4
          %s371 = int_to_ptr.vmem [resolvable:$true] %s370
          %373 = dma.hbm_to_vmem [thread:$0]  %s369, 16, %s371, %s361
        $region66: #{tpu_custom_call.1} parent=19 // pred_fallthru
          _
        // Predicated region
        $region67: #{tpu_custom_call.1} parent=19 // pred_check
          %p374 = pneg %p150
        $region68: #{tpu_custom_call.1} parent=19 // pred_check_branch
          %376 = sbr.rel (%p374) target = $region70
        $region69: #{tpu_custom_call.1} parent=19 // pred_region
          %s377 = sand.u32 %s31, 1
          %s378 = scalar_lea.sflag [#allocation8], %s377
          %s379 = sand.u32 %s140, 1
          %s380 = scalar_lea.vmem [#allocation9], %s379
          %382 = vsyncadd %s378, 0
          %s383 = scalar_lea.hbm %s4, %s31
          %s385 = sshll.u32 %s383, 4
          %s386 = int_to_ptr.hbm [resolvable:$true] %s385
          %s387 = sshll.u32 %s380, 4
          %s388 = int_to_ptr.vmem [resolvable:$true] %s387
          %390 = dma.hbm_to_vmem [thread:$0]  %s386, 16, %s388, %s378
        $region70: #{tpu_custom_call.1} parent=19 // pred_fallthru
          _
      $region20: #{tpu_custom_call.1} parent=5 // pred_fallthru
        _
      %p391 = scmp.le.s32.totalorder 1, %s31
      %p392 = scmp.lt.s32.totalorder %s31, 4
      %p393 = pnand %p391, %p392
      %p394 = pneg %p393
      // Predicated region
      $region71: #{tpu_custom_call.1} parent=5 // pred_check
        _
      $region72: #{tpu_custom_call.1} parent=5 // pred_check_branch
        %396 = sbr.rel (%p393) target = $region74
      $region73: #{tpu_custom_call.1} parent=5 // pred_region
        %s397 = ssub.s32 %s31, 1
        %s398 = sand.u32 %s65, 1
        %s399 = sand.u32 %s65, 1
        %s400 = smul.addr %s399, 32
        %s401 = scalar_lea.vmem [#allocation3], %s400
        // Predicated region
        $region75: #{tpu_custom_call.1} parent=73 // pred_check
          %p402 = pneg %p78
        $region76: #{tpu_custom_call.1} parent=73 // pred_check_branch
          %404 = sbr.rel (%p402) target = $region78
        $region77: #{tpu_custom_call.1} parent=73 // pred_region
          _
        $region78: #{tpu_custom_call.1} parent=73 // pred_fallthru
          _
        %s405 = sand.u32 %s91, 1
        %s406 = scalar_lea.sflag [#allocation5], %s405
        %s407 = sand.u32 %s91, 1
        %s408 = smul.addr %s407, 32
        %s409 = scalar_lea.vmem [#allocation4], %s408
        // Predicated region
        $region79: #{tpu_custom_call.1} parent=73 // pred_check
          %p410 = pneg %p104
        $region80: #{tpu_custom_call.1} parent=73 // pred_check_branch
          %412 = sbr.rel (%p410) target = $region82
        $region81: #{tpu_custom_call.1} parent=73 // pred_region
          %414 = dma.done %s406, 512
        $region82: #{tpu_custom_call.1} parent=73 // pred_fallthru
          _
        %s415 = sand.u32 %s36, 1
        %s416 = scalar_lea.sflag [#allocation8], %s415
        %s417 = sand.u32 %s117, 1
        %s418 = scalar_lea.vmem [#allocation7], %s417
        // Predicated region
        $region83: #{tpu_custom_call.1} parent=73 // pred_check
          %p419 = pneg %p130
        $region84: #{tpu_custom_call.1} parent=73 // pred_check_branch
          %421 = sbr.rel (%p419) target = $region86
        $region85: #{tpu_custom_call.1} parent=73 // pred_region
          %423 = dma.done %s416, 16
        $region86: #{tpu_custom_call.1} parent=73 // pred_fallthru
          _
        %s424 = sand.u32 %s36, 1
        %s425 = scalar_lea.sflag [#allocation8], %s424
        %s426 = sand.u32 %s143, 1
        %s427 = scalar_lea.vmem [#allocation9], %s426
        // Predicated region
        $region87: #{tpu_custom_call.1} parent=73 // pred_check
          %p428 = pneg %p156
        $region88: #{tpu_custom_call.1} parent=73 // pred_check_branch
          %430 = sbr.rel (%p428) target = $region90
        $region89: #{tpu_custom_call.1} parent=73 // pred_region
          %432 = dma.done %s425, 16
        $region90: #{tpu_custom_call.1} parent=73 // pred_fallthru
          _
        %p433 = pneg %p52
        %p434 = pneg %p49
        %s435 = sand.u32 %s65, 1
        %s436 = sand.u32 %s65, 1
        %s437 = smul.addr %s436, 32
        %s438 = scalar_lea.vmem [#allocation3], %s437
        %p439 = pneg %p78
        %p440 = pneg %p75
        %s441 = sand.u32 %s91, 1
        %s442 = scalar_lea.sflag [#allocation5], %s441
        %s443 = sand.u32 %s91, 1
        %s444 = smul.addr %s443, 32
        %s445 = scalar_lea.vmem [#allocation4], %s444
        %p446 = pneg %p104
        %p447 = pneg %p101
        %s448 = sand.u32 %s36, 1
        %s449 = scalar_lea.sflag [#allocation8], %s448
        %s450 = sand.u32 %s117, 1
        %s451 = scalar_lea.vmem [#allocation7], %s450
        %p452 = pneg %p130
        %p453 = pneg %p127
        %s454 = sand.u32 %s36, 1
        %s455 = scalar_lea.sflag [#allocation8], %s454
        %s456 = sand.u32 %s143, 1
        %s457 = scalar_lea.vmem [#allocation9], %s456
        %p458 = pneg %p156
        %p459 = pneg %p153
        %p460 = pneg %p182
        %p461 = pneg %p179
        %s462 = sand.u32 %s169, 1
        %s463 = scalar_lea.sflag [#allocation6], %s462
        %s464 = sand.u32 %s169, 1
        %s465 = smul.addr %s464, 32
        %s466 = scalar_lea.vmem [#allocation10], %s465
        %p467 = pneg %p208
        %p468 = pneg %p205
        %s469 = sand.u32 %s36, 1
        %s470 = scalar_lea.sflag [#allocation12], %s469
        %s471 = sand.u32 %s195, 1
        %s472 = smul.addr %s471, 32
        %s473 = scalar_lea.vmem [#allocation11], %s472
        %p474 = pneg %p234
        %p475 = pneg %p231
        %s476 = sand.u32 %s36, 1
        %s477 = scalar_lea.sflag [#allocation12], %s476
        %s478 = sand.u32 %s221, 1
        %s479 = scalar_lea.vmem [#allocation13], %s478
        %p480 = pneg %p260
        %p481 = pneg %p257
        %s482 = sand.u32 %s247, 1
        %s483 = scalar_lea.sflag [#allocation15], %s482
        %s484 = sand.u32 %s247, 1
        %s485 = scalar_lea.vmem [#allocation14], %s484
        %v486 = vld [vmem:[%s401] sm:$0xff]
        %v487 = vld [vmem:[%s401 + $0x8] sm:$0xff]
        %v488 = vld [vmem:[%s401 + $0x10] sm:$0xff]
        %v489 = vld [vmem:[%s401 + $0x18] sm:$0xff]
        %v490 = vlaneseq
        %v491 = vshrl.u32 %v490, 7
        %v492 = vadd.s32 %v491, 8
        %v493 = vadd.s32 %v491, 16
        %v494 = vadd.s32 %v491, 24
        %v495 = vcvt.s32.f32 %v491
        %v496 = vcvt.s32.f32 %v492
        %v497 = vcvt.s32.f32 %v493
        %v498 = vcvt.s32.f32 %v494
        %v499 = vmul.f32 %v495, -0.010050336
        %v500 = vmul.f32 %v496, -0.010050336
        %v501 = vmul.f32 %v497, -0.010050336
        %v502 = vmul.f32 %v498, -0.010050336
        %v503 = vmul.f32 %v499, 1.442695
        %v504 = vpow.pop %v503
        %v505 = vmul.f32 %v500, 1.442695
        %v506 = vpow.pop %v505
        %v507 = vmul.f32 %v501, 1.442695
        %v508 = vpow.pop %v507
        %v509 = vmul.f32 %v502, 1.442695
        %v510 = vpow.pop %v509
        %v511 = vld [vmem:[%s409] sm:$0xff]
        %v512 = vld [vmem:[%s409 + $0x8] sm:$0xff]
        %v513 = vld [vmem:[%s409 + $0x10] sm:$0xff]
        %v514 = vld [vmem:[%s409 + $0x18] sm:$0xff]
        %v515 = vmul.f32 %v511, 0.72498035
        %v516 = vmul.f32 %v512, 0.72498035
        %v517 = vmul.f32 %v513, 0.72498035
        %v518 = vmul.f32 %v514, 0.72498035
        %v519 = vmul.f32 %v486, %v504
        %v520 = vmul.f32 %v487, %v506
        %v521 = vmul.f32 %v488, %v508
        %v522 = vmul.f32 %v489, %v510
        %v523 = vadd.f32 %v515, %v519
        %v524 = vadd.f32 %v516, %v520
        %v525 = vadd.f32 %v517, %v521
        %v526 = vadd.f32 %v518, %v522
        %527 = vst [vmem:[%s473] sm:$0xff] %v523
        %528 = vst [vmem:[%s473 + $0x8] sm:$0xff] %v524
        %529 = vst [vmem:[%s473 + $0x10] sm:$0xff] %v525
        %530 = vst [vmem:[%s473 + $0x18] sm:$0xff] %v526
        %v531 = vadd.f32 %v523, %v524
        %v532 = vadd.f32 %v531, %v525
        %v533 = vadd.f32 %v532, %v526
        %v534 = vrot.slane %v533, 4
        %v535 = vadd.f32 %v533, %v534
        %v536 = vrot.slane %v535, 2
        %v537 = vadd.f32 %v535, %v536
        %v538 = vrot.slane %v537, 1
        %v539 = vadd.f32 %v537, %v538
        %v540 = vrcp.pop 32.0
        %v541 = vmul.f32 32.0, %v540
        %v542 = vsub.f32 1.0, %v541
        %v543 = vmul.f32 %v540, %v542
        %v544 = vadd.f32 %v540, %v543
        %vm545 = vweird.f32 %v540
        %v546 = vsel %vm545, %v540, %v544
        %v547 = vmul.f32 %v539, %v546
        %v548 = vsub.f32 %v523, %v547
        %v549 = vsub.f32 %v524, %v547
        %v550 = vsub.f32 %v525, %v547
        %v551 = vsub.f32 %v526, %v547
        %v552 = vmul.f32 %v548, %v548
        %v553 = vmul.f32 %v549, %v549
        %v554 = vmul.f32 %v550, %v550
        %v555 = vmul.f32 %v551, %v551
        %v556 = vadd.f32 %v552, %v553
        %v557 = vadd.f32 %v556, %v554
        %v558 = vadd.f32 %v557, %v555
        %v559 = vrot.slane %v558, 4
        %v560 = vadd.f32 %v558, %v559
        %v561 = vrot.slane %v560, 2
        %v562 = vadd.f32 %v560, %v561
        %v563 = vrot.slane %v562, 1
        %v564 = vadd.f32 %v562, %v563
        %s565 = sld [smem:[#allocation2]]
        %s566 = sadd.f32 %s565, 32.0
        %v567 = vld [vmem:[%s418] sm:$0x1]
        %v568 = vsub.f32 %v547, %v567
        %v569 = vld [vmem:[%s427] sm:$0x1]
        %v570 = vadd.f32 %v569, %v564
        %v571 = vmul.f32 %v568, %v568
        %s572 = smul.f32 %s565, 32.0
        %v573 = vstv %s566
        %v574 = vrcp.pop %v573
        %v575 = vmul.f32 %v573, %v574
        %v576 = vsub.f32 1.0, %v575
        %v577 = vmul.f32 %v574, %v576
        %v578 = vadd.f32 %v574, %v577
        %vm579 = vweird.f32 %v573
        %vm580 = vweird.f32 %v574
        %vm581 = vmor %vm579, %vm580
        %v582 = vsel %vm581, %v574, %v578
        %v583 = vand.u32 2147483647, %v573
        %vm584 = vcmp.eq.f32.partialorder %v583, 8.507059e+37
        %v585 = vand.u32 %v573, 2147483648
        %v586 = vor.u32 1.1754944e-38, %v585
        %v587 = vsel %vm584, %v586, %v582
        %s588 = vtos %v587
        %s589 = smul.f32 %s572, %s588
        %v590 = vstv %s589
        %v591 = vmul.f32 %v571, %v590
        %v592 = vadd.f32 %v570, %v591
        %v593 = vstv %s566
        %v594 = vrcp.pop %v593
        %v595 = vmul.f32 %v593, %v594
        %v596 = vsub.f32 1.0, %v595
        %v597 = vmul.f32 %v594, %v596
        %v598 = vadd.f32 %v594, %v597
        %vm599 = vweird.f32 %v593
        %vm600 = vweird.f32 %v594
        %vm601 = vmor %vm599, %vm600
        %v602 = vsel %vm601, %v594, %v598
        %v603 = vand.u32 2147483647, %v593
        %vm604 = vcmp.eq.f32.partialorder %v603, 8.507059e+37
        %v605 = vand.u32 %v593, 2147483648
        %v606 = vor.u32 1.1754944e-38, %v605
        %v607 = vsel %vm604, %v606, %v602
        %s608 = vtos %v607
        %s609 = smul.f32 32.0, %s608
        %v610 = vstv %s609
        %v611 = vmul.f32 %v568, %v610
        %v612 = vadd.f32 %v567, %v611
        %613 = vst [vmem:[%s479] sm:$0x1] %v612
        %614 = vst [vmem:[%s485] sm:$0x1] %v592
        %v615 = vstv %s566
        %v616 = vrcp.pop %v615
        %v617 = vmul.f32 %v615, %v616
        %v618 = vsub.f32 1.0, %v617
        %v619 = vmul.f32 %v616, %v618
        %v620 = vadd.f32 %v616, %v619
        %vm621 = vweird.f32 %v615
        %vm622 = vweird.f32 %v616
        %vm623 = vmor %vm621, %vm622
        %v624 = vsel %vm623, %v616, %v620
        %v625 = vand.u32 2147483647, %v615
        %vm626 = vcmp.eq.f32.partialorder %v625, 8.507059e+37
        %v627 = vand.u32 %v615, 2147483648
        %v628 = vor.u32 1.1754944e-38, %v627
        %v629 = vsel %vm626, %v628, %v624
        %v630 = vmul.f32 %v592, %v629
        %v631 = vrsqrt.pop %v630
        %v632 = vmul.f32 %v631, %v630
        %v633 = vmul.f32 %v632, %v631
        %v634 = vmul.f32 0.5, %v633
        %v635 = vsub.f32 1.5, %v634
        %v636 = vmul.f32 %v631, %v635
        %v637 = vmul.f32 %v630, %v636
        %vm638 = vcmp.eq.f32.partialorder %v630, inf
        %v639 = vsel %vm638, %v630, %v637
        %vm640 = vcmp.eq.f32.partialorder %v630, 0.0
        %v641 = vand.u32 %v630, 2147483648
        %v642 = vsel %vm640, %v641, %v639
        %v643 = vadd.f32 %v642, 1e-05
        %v644 = vrcp.pop %v643
        %p645 = scmp.gt.f32.partialorder %s566, 2.0
        %v647 = vperm.slane %v644, 0
        %v649 = vmul.f32 %v486, %v647
        %v650 = vmul.f32 %v487, %v647
        %v651 = vmul.f32 %v488, %v647
        %v652 = vmul.f32 %v489, %v647
        %s653 = scalar_select %p645, 1, 0
        %v654 = vstv %s653
        %vm655 = vcmp.eq.s32.totalorder %v654, 1
        %v656 = vsel %vm655, %v649, %v486
        %v657 = vsel %vm655, %v650, %v487
        %v658 = vsel %vm655, %v651, %v488
        %v659 = vsel %vm655, %v652, %v489
        %660 = vst [vmem:[%s466] sm:$0xff] %v656
        %661 = vst [vmem:[%s466 + $0x8] sm:$0xff] %v657
        %662 = vst [vmem:[%s466 + $0x10] sm:$0xff] %v658
        %663 = vst [vmem:[%s466 + $0x18] sm:$0xff] %v659
        %s664 = sand.u32 %s169, 1
        %s665 = scalar_lea.sflag [#allocation6], %s664
        %s666 = sand.u32 %s169, 1
        %s667 = smul.addr %s666, 32
        %s668 = scalar_lea.vmem [#allocation10], %s667
        %s669 = sand.u32 %s36, 1
        %s670 = scalar_lea.sflag [#allocation12], %s669
        %s671 = sand.u32 %s195, 1
        %s672 = smul.addr %s671, 32
        %s673 = scalar_lea.vmem [#allocation11], %s672
        %s674 = sand.u32 %s36, 1
        %s675 = scalar_lea.sflag [#allocation12], %s674
        %s676 = sand.u32 %s221, 1
        %s677 = scalar_lea.vmem [#allocation13], %s676
        %s678 = sand.u32 %s247, 1
        %s679 = scalar_lea.sflag [#allocation15], %s678
        %s680 = sand.u32 %s247, 1
        %s681 = scalar_lea.vmem [#allocation14], %s680
        // Predicated region
        $region91: #{tpu_custom_call.1} parent=73 // pred_check
          %p682 = pneg %p179
        $region92: #{tpu_custom_call.1} parent=73 // pred_check_branch
          %684 = sbr.rel (%p682) target = $region94
        $region93: #{tpu_custom_call.1} parent=73 // pred_region
          %686 = vsyncadd %s665, 0
          %s687 = smul.addr %s36, 8
          %s688 = scalar_lea.hbm %s5, %s687
          %s689 = sshll.u32 %s668, 4
          %s690 = int_to_ptr.vmem [resolvable:$true] %s689
          %s691 = sshll.u32 %s688, 4
          %s692 = int_to_ptr.hbm [resolvable:$true] %s691
          %697 = dma.vmem_to_hbm [thread:$0]  %s690, 512, %s692, %s665, 128, 384, 8
        $region94: #{tpu_custom_call.1} parent=73 // pred_fallthru
          _
        // Predicated region
        $region95: #{tpu_custom_call.1} parent=73 // pred_check
          %p698 = pneg %p205
        $region96: #{tpu_custom_call.1} parent=73 // pred_check_branch
          %700 = sbr.rel (%p698) target = $region98
        $region97: #{tpu_custom_call.1} parent=73 // pred_region
          %702 = vsyncadd %s670, 0
          %s703 = smul.addr %s36, 8
          %s704 = scalar_lea.hbm %s6, %s703
          %s705 = sshll.u32 %s673, 4
          %s706 = int_to_ptr.vmem [resolvable:$true] %s705
          %s707 = sshll.u32 %s704, 4
          %s708 = int_to_ptr.hbm [resolvable:$true] %s707
          %713 = dma.vmem_to_hbm [thread:$0]  %s706, 512, %s708, %s670, 128, 384, 8
        $region98: #{tpu_custom_call.1} parent=73 // pred_fallthru
          _
        // Predicated region
        $region99: #{tpu_custom_call.1} parent=73 // pred_check
          %p714 = pneg %p231
        $region100: #{tpu_custom_call.1} parent=73 // pred_check_branch
          %716 = sbr.rel (%p714) target = $region102
        $region101: #{tpu_custom_call.1} parent=73 // pred_region
          %718 = vsyncadd %s675, 0
          %s719 = scalar_lea.hbm %s7, %s36
          %s721 = sshll.u32 %s677, 4
          %s722 = int_to_ptr.vmem [resolvable:$true] %s721
          %s723 = sshll.u32 %s719, 4
          %s724 = int_to_ptr.hbm [resolvable:$true] %s723
          %726 = dma.vmem_to_hbm [thread:$0]  %s722, 16, %s724, %s675
        $region102: #{tpu_custom_call.1} parent=73 // pred_fallthru
          _
        // Predicated region
        $region103: #{tpu_custom_call.1} parent=73 // pred_check
          %p727 = pneg %p257
        $region104: #{tpu_custom_call.1} parent=73 // pred_check_branch
          %729 = sbr.rel (%p727) target = $region106
        $region105: #{tpu_custom_call.1} parent=73 // pred_region
          %731 = vsyncadd %s679, 0
          %s732 = scalar_lea.hbm %s8, %s36
          %s734 = sshll.u32 %s681, 4
          %s735 = int_to_ptr.vmem [resolvable:$true] %s734
          %s736 = sshll.u32 %s732, 4
          %s737 = int_to_ptr.hbm [resolvable:$true] %s736
          %739 = dma.vmem_to_hbm [thread:$0]  %s735, 16, %s737, %s679
        $region106: #{tpu_custom_call.1} parent=73 // pred_fallthru
          _
      $region74: #{tpu_custom_call.1} parent=5 // pred_fallthru
        _
      %p740 = scmp.le.s32.totalorder 2, %s31
      // Predicated region
      $region107: #{tpu_custom_call.1} parent=5 // pred_check
        %p741 = pneg %p740
      $region108: #{tpu_custom_call.1} parent=5 // pred_check_branch
        %743 = sbr.rel (%p741) target = $region110
      $region109: #{tpu_custom_call.1} parent=5 // pred_region
        %s744 = ssub.s32 %s31, 2
        // Predicated region
        $region111: #{tpu_custom_call.1} parent=109 // pred_check
          %p745 = pneg %p185
        $region112: #{tpu_custom_call.1} parent=109 // pred_check_branch
          %747 = sbr.rel (%p745) target = $region114
        $region113: #{tpu_custom_call.1} parent=109 // pred_region
          %s748 = sand.u32 %s170, 1
          %s749 = scalar_lea.sflag [#allocation6], %s748
          %s750 = sand.u32 %s170, 1
          %s751 = smul.addr %s750, 32
          %s752 = scalar_lea.vmem [#allocation10], %s751
          %754 = dma.done %s749, 512
        $region114: #{tpu_custom_call.1} parent=109 // pred_fallthru
          _
        // Predicated region
        $region115: #{tpu_custom_call.1} parent=109 // pred_check
          %p755 = pneg %p211
        $region116: #{tpu_custom_call.1} parent=109 // pred_check_branch
          %757 = sbr.rel (%p755) target = $region118
        $region117: #{tpu_custom_call.1} parent=109 // pred_region
          %s758 = sand.u32 %s37, 1
          %s759 = scalar_lea.sflag [#allocation12], %s758
          %s760 = sand.u32 %s196, 1
          %s761 = smul.addr %s760, 32
          %s762 = scalar_lea.vmem [#allocation11], %s761
          %764 = dma.done %s759, 512
        $region118: #{tpu_custom_call.1} parent=109 // pred_fallthru
          _
        // Predicated region
        $region119: #{tpu_custom_call.1} parent=109 // pred_check
          %p765 = pneg %p237
        $region120: #{tpu_custom_call.1} parent=109 // pred_check_branch
          %767 = sbr.rel (%p765) target = $region122
        $region121: #{tpu_custom_call.1} parent=109 // pred_region
          %s768 = sand.u32 %s37, 1
          %s769 = scalar_lea.sflag [#allocation12], %s768
          %s770 = sand.u32 %s222, 1
          %s771 = scalar_lea.vmem [#allocation13], %s770
          %773 = dma.done %s769, 16
        $region122: #{tpu_custom_call.1} parent=109 // pred_fallthru
          _
        // Predicated region
        $region123: #{tpu_custom_call.1} parent=109 // pred_check
          %p774 = pneg %p263
        $region124: #{tpu_custom_call.1} parent=109 // pred_check_branch
          %776 = sbr.rel (%p774) target = $region126
        $region125: #{tpu_custom_call.1} parent=109 // pred_region
          %s777 = sand.u32 %s248, 1
          %s778 = scalar_lea.sflag [#allocation15], %s777
          %s779 = sand.u32 %s248, 1
          %s780 = scalar_lea.vmem [#allocation14], %s779
          %782 = dma.done %s778, 16
        $region126: #{tpu_custom_call.1} parent=109 // pred_fallthru
          _
      $region110: #{tpu_custom_call.1} parent=5 // pred_fallthru
        _
    $region6: #{tpu_custom_call.1} parent=1 // loop_footer
      %s35 = sadd.s32 1, %s31
    $region7: #{tpu_custom_call.1} parent=1 // loop_footer_branch
      %30 = sbr.rel target = $region3
    $region8: #{tpu_custom_call.1} parent=1 // loop_exit
      _
    %783 = vsyncpa [#allocation5], 1
    %s784 = scalar_lea.sflag [#allocation5], 1
    %785 = vsyncpa %s784, 1
    %786 = vsyncpa [#allocation8], 1
    %s787 = scalar_lea.sflag [#allocation8], 1
    %788 = vsyncpa %s787, 1
    %789 = vsyncpa [#allocation6], 1
    %s790 = scalar_lea.sflag [#allocation6], 1
    %791 = vsyncpa %s790, 1
    %792 = vsyncpa [#allocation12], 1
    %s793 = scalar_lea.sflag [#allocation12], 1
    %794 = vsyncpa %s793, 1
    %795 = vsyncpa [#allocation15], 1
    %s796 = scalar_lea.sflag [#allocation15], 1
    %797 = vsyncpa %s796, 1

</llo_original>
